<compile_context>
chip_gen: v7x
topology: tpu7x:2x2x1
jax: 0.10.0
libtpu: 0.0.40
codegen_flags: <defaults>
</compile_context>

<pallas_src>
import functools

import jax
import jax.numpy as jnp
from jax import lax
from jax.experimental import pallas as pl
from jax.experimental.pallas import tpu as pltpu


def _vmem_budget_bytes():
    phys = 128 * 2**20
    try:
        info = pltpu.get_tpu_info()
        phys = int(getattr(info, "vmem_capacity_bytes", phys))
    except Exception:
        pass
    return int(phys * 0.75)


def _dwconv_kernel(w_ref, b_ref, x_ref, o_ref, *scratch,
                   kn_sz, sd, pd, l_in, l_out, row_chunk):
    # w_ref  : (kn_sz, TC)       depthwise weights, tap k for every channel in block
    # b_ref  : (1, TC)           bias
    # x_ref  : (Bblk, L, TC)     raw (unpadded) input block
    # o_ref  : (Bblk, L_out, TC)
    # scratch: optional (Bblk, L + 2*pd, TC) padded-input VMEM scratch (pd > 0 only)
    bblk = x_ref.shape[0]
    tc = x_ref.shape[-1]

    # Hoisted: single cast of the small weight/bias blocks.
    w_f32 = w_ref[...].astype(jnp.float32)                    # (kn_sz, TC)
    b_f32 = b_ref[...].astype(jnp.float32).reshape(1, 1, tc)  # (1, 1, TC)

    if pd > 0:
        # Materialise zero padding once (input dtype).  One extra VMEM pass;
        # every tap then reads a plain in-bounds (strided) slice and every
        # output chunk store is unmasked and aligned.
        xpad_ref = scratch[0]
        zeros_edge = jnp.zeros((bblk, pd, tc), x_ref.dtype)
        xpad_ref[:, 0:pd, :] = zeros_edge
        xpad_ref[:, pd:pd + l_in, :] = x_ref[...]
        xpad_ref[:, pd + l_in:pd + l_in + pd, :] = zeros_edge
        src = xpad_ref
    else:
        # pd == 0: all taps are in-bounds by construction; read x_ref directly.
        src = x_ref

    def emit_chunk(r0, nrows):
        # Register accumulation: K strided loads + K FMAs, ONE store.
        acc = None
        for k in range(kn_sz):
            start = r0 * sd + k
            sl = pl.ds(start, nrows, stride=sd) if sd > 1 else pl.ds(start, nrows)
            xs = src[:, sl, :].astype(jnp.float32)             # (Bblk, nrows, TC)
            term = xs * w_f32[k, :]
            acc = term if acc is None else acc + term
        acc = acc + b_f32
        o_ref[:, pl.ds(r0, nrows), :] = acc.astype(o_ref.dtype)

    n_full = l_out // row_chunk
    rem = l_out - n_full * row_chunk
    if n_full <= 4:
        for ci in range(n_full):                               # static unroll
            emit_chunk(ci * row_chunk, row_chunk)
    else:
        def body(ci, carry):
            emit_chunk(pl.multiple_of(ci * row_chunk, 8), row_chunk)
            return carry
        lax.fori_loop(0, n_full, body, 0)
    if rem > 0:
        emit_chunk(n_full * row_chunk, rem)


def _dwconv_pallas(x, weight, bias, *, stride, padding, l_out):
    B, L, C = x.shape
    kn_sz = weight.shape[1]
    sd, pd = stride, padding

    # Lane-dense channel tiling when possible; otherwise one full-C block
    # (full-dim block is the only other (8,128)-legal choice for the lane axis).
    tc = 128 if (C % 128 == 0) else C
    n_cb = C // tc

    isz = jnp.dtype(x.dtype).itemsize
    pad_rows = (L + 2 * pd) if pd > 0 else 0
    # Per batch element per grid step: double-buffered in/out blocks + pad scratch.
    per_b = tc * isz * (2 * L + 2 * l_out + pad_rows)

    budget = _vmem_budget_bytes()

    # Batch block: enough rows per grid step for DMA efficiency, bounded to keep
    # per-chunk register accumulators and per-step VMEM small.
    bblk = 1
    for cand in range(1, B + 1):
        if cand > 16:
            break
        if B % cand:
            continue
        if cand * per_b > budget // 2:
            break
        bblk = cand
        if cand * L >= 512:
            break
    n_bb = B // bblk

    # Output-row chunk for register accumulation (multiple of 8 rows; remainder
    # chunk handles l_out not being a multiple).
    row_chunk = max(8, (128 // bblk) // 8 * 8)

    w_kc = weight.T                     # (kn_sz, C)
    b_1c = bias.reshape(1, C)           # (1, C)

    kernel = functools.partial(
        _dwconv_kernel, kn_sz=kn_sz, sd=sd, pd=pd, l_in=L, l_out=l_out,
        row_chunk=row_chunk)

    scratch_shapes = []
    if pd > 0:
        scratch_shapes.append(pltpu.VMEM((bblk, L + 2 * pd, tc), x.dtype))

    est = bblk * per_b + 4 * (kn_sz + 1) * tc * 4
    vmem_limit = int(min(budget, max(32 * 2**20, 2 * est)))

    return pl.pallas_call(
        kernel,
        out_shape=jax.ShapeDtypeStruct((B, l_out, C), x.dtype),
        grid_spec=pltpu.PrefetchScalarGridSpec(
            num_scalar_prefetch=0,
            # Channel-block outer, batch-block inner: weight/bias blocks stay
            # resident across the (fast-varying) batch steps.
            grid=(n_cb, n_bb),
            in_specs=[
                pl.BlockSpec((kn_sz, tc), lambda c, b: (0, c)),
                pl.BlockSpec((1, tc), lambda c, b: (0, c)),
                pl.BlockSpec((bblk, L, tc), lambda c, b: (b, 0, c)),
            ],
            out_specs=pl.BlockSpec((bblk, l_out, tc), lambda c, b: (b, 0, c)),
            scratch_shapes=scratch_shapes,
        ),
        compiler_params=pltpu.CompilerParams(
            dimension_semantics=("parallel", "parallel"),
            vmem_limit_bytes=vmem_limit,
        ),
    )(w_kc, b_1c, x)


def depthwise_conv1d(x, weight, bias, *, stride, padding):
    """x: (B, L, C); weight: (C, kn_sz) depthwise taps; bias: (C,).

    Returns (B, L_out, C), matching
    nn.Conv1d(C, C, kn_sz, stride, padding, groups=C) applied along L.
    """
    B, L, C = x.shape
    kn_sz = weight.shape[1]
    l_out = (L + 2 * padding - kn_sz) // stride + 1
    assert l_out > 0, "configuration produces empty output"

    # Lane-density fix for small C: fold g batch elements into the lane axis,
    # (B, L, C) -> (B/g, L, g*C).  Depthwise conv is independent per (batch,
    # channel), so this is pure layout plumbing; weights/bias are tiled g times.
    g = 1
    if C < 128:
        for cand in range(max(1, 128 // C), 0, -1):
            if B % cand == 0:
                g = cand
                break
    if g > 1:
        xf = x.reshape(B // g, g, L, C).transpose(0, 2, 1, 3).reshape(B // g, L, g * C)
        wf = jnp.tile(weight, (g, 1))
        bf = jnp.tile(bias, g)
        of = _dwconv_pallas(xf, wf, bf, stride=stride, padding=padding, l_out=l_out)
        return of.reshape(B // g, l_out, g, C).transpose(0, 2, 1, 3).reshape(B, l_out, C)
    return _dwconv_pallas(x, weight, bias, stride=stride, padding=padding, l_out=l_out)


def _reference(x, weight, bias, *, stride, padding):
    # Pure-JAX reference: depthwise conv via grouped conv_general_dilated.
    B, L, C = x.shape
    kn_sz = weight.shape[1]
    lhs = jnp.transpose(x, (0, 2, 1))                   # (B, C, L)  == NCH
    rhs = weight.reshape(C, 1, kn_sz)                   # (C, 1, K)  == OIH
    out = lax.conv_general_dilated(
        lhs, rhs,
        window_strides=(stride,),
        padding=[(padding, padding)],
        feature_group_count=C,
        dimension_numbers=("NCH", "OIH", "NCH"),
    )
    out = out + bias.reshape(1, C, 1)
    return jnp.transpose(out, (0, 2, 1))                # (B, L_out, C)


if __name__ == "__main__":
    key = jax.random.PRNGKey(0)

    def run_case(case_key, B, L, C, K, sd, pd):
        kx, kw, kb = jax.random.split(case_key, 3)
        x = jax.random.normal(kx, (B, L, C), dtype=jnp.float32)
        weight = jax.random.normal(kw, (C, K), dtype=jnp.float32) * 0.1
        bias = jax.random.normal(kb, (C,), dtype=jnp.float32) * 0.1

        out = jax.block_until_ready(
            depthwise_conv1d(x, weight, bias, stride=sd, padding=pd))
        ref = _reference(x, weight, bias, stride=sd, padding=pd)
        assert out.shape == ref.shape, (out.shape, ref.shape)
        assert jnp.allclose(out, ref, atol=1e-5, rtol=1e-5), (
            f"mismatch vs reference (B={B}, L={L}, C={C}, K={K}, sd={sd}, pd={pd})")

    keys = jax.random.split(key, 4)
    # Lane-dense channel path, 'same' padding:  DepthWiseConv(128, 3, 1, 1)
    run_case(keys[0], B=2, L=16, C=128, K=3, sd=1, pd=1)
    # Strided + batch->lane fold path:          DepthWiseConv(32, 5, 2, 2)
    run_case(keys[1], B=2, L=16, C=32, K=5, sd=2, pd=2)
    # No-padding (scratch-free) path:           DepthWiseConv(128, 3, 1, 0)
    run_case(keys[2], B=2, L=16, C=128, K=3, sd=1, pd=0)
    # Odd L, stride 3, fold to exactly 128 lanes: DepthWiseConv(64, 4, 3, 2)
    run_case(keys[3], B=4, L=33, C=64, K=4, sd=3, pd=2)

    print("KERNEL_OK")
</pallas_src>

<mosaic_0001>
module attributes {stable_mosaic.version = 11 : i64} {
  func.func @_dwconv_kernel(%arg0: i32, %arg1: i32, %arg2: memref<3x128xf32, #tpu.memory_space<vmem>>, %arg3: memref<1x128xf32, #tpu.memory_space<vmem>>, %arg4: memref<2x16x128xf32, #tpu.memory_space<vmem>>, %arg5: memref<2x16x128xf32, #tpu.memory_space<vmem>>, %arg6: memref<2x18x128xf32, #tpu.memory_space<vmem>>) attributes {dimension_semantics = [#tpu.dimension_semantics<parallel>, #tpu.dimension_semantics<parallel>], iteration_bounds = array<i64: 1, 1>, scalar_prefetch = 0 : i64, scratch_operands = 1 : i64, tpu.core_type = #tpu.core_type<tc>, window_params = [{transform_indices = @transform_0, window_bounds = array<i64: 3, 128>}, {transform_indices = @transform_1, window_bounds = array<i64: 1, 128>}, {transform_indices = @transform_2, window_bounds = array<i64: 2, 16, 128>}, {transform_indices = @transform_3, window_bounds = array<i64: 2, 16, 128>}]} {
    %c0 = arith.constant 0 : index
    %c0_0 = arith.constant 0 : index
    %0 = vector.load %arg2[%c0, %c0_0] : memref<3x128xf32, #tpu.memory_space<vmem>>, vector<3x128xf32>
    %c0_1 = arith.constant 0 : index
    %c0_2 = arith.constant 0 : index
    %1 = vector.load %arg3[%c0_1, %c0_2] : memref<1x128xf32, #tpu.memory_space<vmem>>, vector<1x128xf32>
    %2 = vector.shape_cast %1 : vector<1x128xf32> to vector<1x1x128xf32>
    %cst = arith.constant 0.000000e+00 : f32
    %3 = vector.broadcast %cst : f32 to vector<2x1x128xf32>
    %c0_3 = arith.constant 0 : index
    %c0_4 = arith.constant 0 : index
    %c0_5 = arith.constant 0 : index
    %4 = vector.load %arg6[%c0_3, %c0_4, %c0_5] : memref<2x18x128xf32, #tpu.memory_space<vmem>>, vector<2x1x128xf32>
    tpu.vector_store %arg6[%c0_3, %c0_4, %c0_5], %3 {strides = array<i32>} : memref<2x18x128xf32, #tpu.memory_space<vmem>>, vector<2x1x128xf32>,
    %c0_6 = arith.constant 0 : index
    %c0_7 = arith.constant 0 : index
    %c0_8 = arith.constant 0 : index
    %5 = vector.load %arg4[%c0_6, %c0_7, %c0_8] : memref<2x16x128xf32, #tpu.memory_space<vmem>>, vector<2x16x128xf32>
    %c0_9 = arith.constant 0 : index
    %c1 = arith.constant 1 : index
    %c0_10 = arith.constant 0 : index
    %6 = vector.load %arg6[%c0_9, %c1, %c0_10] : memref<2x18x128xf32, #tpu.memory_space<vmem>>, vector<2x16x128xf32>
    tpu.vector_store %arg6[%c0_9, %c1, %c0_10], %5 {strides = array<i32>} : memref<2x18x128xf32, #tpu.memory_space<vmem>>, vector<2x16x128xf32>,
    %c0_11 = arith.constant 0 : index
    %c17 = arith.constant 17 : index
    %c0_12 = arith.constant 0 : index
    %7 = vector.load %arg6[%c0_11, %c17, %c0_12] : memref<2x18x128xf32, #tpu.memory_space<vmem>>, vector<2x1x128xf32>
    tpu.vector_store %arg6[%c0_11, %c17, %c0_12], %3 {strides = array<i32>} : memref<2x18x128xf32, #tpu.memory_space<vmem>>, vector<2x1x128xf32>,
    %c0_13 = arith.constant 0 : index
    %c0_14 = arith.constant 0 : index
    %c0_15 = arith.constant 0 : index
    %8 = vector.load %arg6[%c0_13, %c0_14, %c0_15] : memref<2x18x128xf32, #tpu.memory_space<vmem>>, vector<2x16x128xf32>
    %9 = vector.extract_strided_slice %0 {offsets = [0, 0], sizes = [1, 128], strides = [1, 1]} : vector<3x128xf32> to vector<1x128xf32>
    %10 = vector.shape_cast %9 : vector<1x128xf32> to vector<128xf32>
    %11 = vector.shape_cast %10 : vector<128xf32> to vector<1x1x128xf32>
    %12 = vector.broadcast %11 : vector<1x1x128xf32> to vector<2x16x128xf32>
    %13 = arith.mulf %8, %12 : vector<2x16x128xf32>
    %c0_16 = arith.constant 0 : index
    %c1_17 = arith.constant 1 : index
    %c0_18 = arith.constant 0 : index
    %14 = vector.load %arg6[%c0_16, %c1_17, %c0_18] : memref<2x18x128xf32, #tpu.memory_space<vmem>>, vector<2x16x128xf32>
    %15 = vector.extract_strided_slice %0 {offsets = [1, 0], sizes = [1, 128], strides = [1, 1]} : vector<3x128xf32> to vector<1x128xf32>
    %16 = vector.shape_cast %15 : vector<1x128xf32> to vector<128xf32>
    %17 = vector.shape_cast %16 : vector<128xf32> to vector<1x1x128xf32>
    %18 = vector.broadcast %17 : vector<1x1x128xf32> to vector<2x16x128xf32>
    %19 = arith.mulf %14, %18 : vector<2x16x128xf32>
    %20 = arith.addf %13, %19 : vector<2x16x128xf32>
    %c0_19 = arith.constant 0 : index
    %c2 = arith.constant 2 : index
    %c0_20 = arith.constant 0 : index
    %21 = vector.load %arg6[%c0_19, %c2, %c0_20] : memref<2x18x128xf32, #tpu.memory_space<vmem>>, vector<2x16x128xf32>
    %22 = vector.extract_strided_slice %0 {offsets = [2, 0], sizes = [1, 128], strides = [1, 1]} : vector<3x128xf32> to vector<1x128xf32>
    %23 = vector.shape_cast %22 : vector<1x128xf32> to vector<128xf32>
    %24 = vector.shape_cast %23 : vector<128xf32> to vector<1x1x128xf32>
    %25 = vector.broadcast %24 : vector<1x1x128xf32> to vector<2x16x128xf32>
    %26 = arith.mulf %21, %25 : vector<2x16x128xf32>
    %27 = arith.addf %20, %26 : vector<2x16x128xf32>
    %28 = vector.broadcast %2 : vector<1x1x128xf32> to vector<2x16x128xf32>
    %29 = arith.addf %27, %28 : vector<2x16x128xf32>
    %c0_21 = arith.constant 0 : index
    %c0_22 = arith.constant 0 : index
    %c0_23 = arith.constant 0 : index
    %30 = vector.load %arg5[%c0_21, %c0_22, %c0_23] : memref<2x16x128xf32, #tpu.memory_space<vmem>>, vector<2x16x128xf32>
    tpu.vector_store %arg5[%c0_21, %c0_22, %c0_23], %29 {strides = array<i32>} : memref<2x16x128xf32, #tpu.memory_space<vmem>>, vector<2x16x128xf32>,
    return
  }
  func.func @transform_0(%arg0: i32, %arg1: i32) -> (i32, i32) {
    %c0_i32 = arith.constant 0 : i32
    %c0_i32_0 = arith.constant 0 : i32
    return %c0_i32, %arg0 : i32, i32
  }
  func.func @transform_1(%arg0: i32, %arg1: i32) -> (i32, i32) {
    %c0_i32 = arith.constant 0 : i32
    %c0_i32_0 = arith.constant 0 : i32
    return %c0_i32, %arg0 : i32, i32
  }
  func.func @transform_2(%arg0: i32, %arg1: i32) -> (i32, i32, i32) {
    %c0_i32 = arith.constant 0 : i32
    %c0_i32_0 = arith.constant 0 : i32
    return %arg1, %c0_i32, %arg0 : i32, i32, i32
  }
  func.func @transform_3(%arg0: i32, %arg1: i32) -> (i32, i32, i32) {
    %c0_i32 = arith.constant 0 : i32
    %c0_i32_0 = arith.constant 0 : i32
    return %arg1, %c0_i32, %arg0 : i32, i32, i32
  }
}

</mosaic_0001>

<llo_original>
// kernel: tpu_custom_call.1
$region0: #{tpu_custom_call.1}
  #allocation0 [shape = 'u32[]', space=smem, size = 0x4, offset = 0x4, fixed_abs, tag = 'smem constant byte address 0x4 - core index']
  #allocation1 [shape = 'u32[144,128]{1,0:T(1,128)}', space=vmem, size = 0x12000, scoped, tag = 'internal scratch']
  #allocation2 [shape = 'f32[2,18,128]{2,1,0:T(8,128)}', space=vmem, size = 0x6000, scoped, tag = 'scratch operand']
  %s0 = inlined_call_operand.hbm [shape: f32[3,128], index: 0, kind: input, shape index: {}]
  %s1 = inlined_call_operand.vmem [shape: f32[1,128], index: 1, kind: input, shape index: {}]
  %s2 = inlined_call_operand.hbm [shape: f32[2,16,128], index: 2, kind: input, shape index: {}]
  %s3 = inlined_call_operand.hbm [shape: f32[2,16,128], index: 3, kind: output, shape index: {}]
  %s4 = sld [smem:[#allocation0]]
  $region30: #{tpu_custom_call.1} parent=0
    _
  %s6 = ssub.s32 1, %s4
  %s7 = scalar_select 0, %s6, %s4
  $region1: #{tpu_custom_call.1} parent=0
    #allocation3 [shape = 'u8[2048]{0}', space=vmem, size = 0x800, scoped, tag = 'input window, operand 0, single buffered']
    #allocation4 [shape = 's32[1]{0}', space=sflag, size = 0x4, scoped, tag = 'scoped memory for tpu_custom_call.1']
    #allocation5 [shape = 's32[1]{0}', space=sflag, size = 0x4, scoped, tag = 'scoped memory for tpu_custom_call.1']
    #allocation6 [shape = 'u8[16384]{0}', space=vmem, size = 0x4000, scoped, tag = 'input window, operand 2, single buffered']
    #allocation7 [shape = 's32[1]{0}', space=sflag, size = 0x4, scoped, tag = 'scoped memory for tpu_custom_call.1']
    #allocation8 [shape = 'u8[16384]{0}', space=vmem, size = 0x4000, scoped, tag = 'output window, operand 0, single buffered']
    %8 = vsyncpa [#allocation4], 0
    %9 = vsyncpa [#allocation7], 0
    %10 = vsyncpa [#allocation5], 0
    // Predicated region
    $region2: #{tpu_custom_call.1} parent=1 // pred_check
      _
    $region3: #{tpu_custom_call.1} parent=1 // pred_check_branch
      %12 = sbr.rel (0) target = $region5
    $region4: #{tpu_custom_call.1} parent=1 // pred_region
      %s14 = ssub.s32 64, 64
      %15 = vsyncadd [#allocation4], %s14
      %s17 = sshll.u32 [#allocation3], 4
      %s18 = int_to_ptr.vmem [resolvable:$true] %s17
      %20 = dma.hbm_to_vmem [thread:$0]  %s0, 64, %s18, [#allocation4]
    $region5: #{tpu_custom_call.1} parent=1 // pred_fallthru
      _
    // Predicated region
    $region6: #{tpu_custom_call.1} parent=1 // pred_check
      _
    $region7: #{tpu_custom_call.1} parent=1 // pred_check_branch
      %22 = sbr.rel (0) target = $region9
    $region8: #{tpu_custom_call.1} parent=1 // pred_region
      _
    $region9: #{tpu_custom_call.1} parent=1 // pred_fallthru
      _
    // Predicated region
    $region10: #{tpu_custom_call.1} parent=1 // pred_check
      _
    $region11: #{tpu_custom_call.1} parent=1 // pred_check_branch
      %24 = sbr.rel (0) target = $region13
    $region12: #{tpu_custom_call.1} parent=1 // pred_region
      %s26 = ssub.s32 512, 512
      %27 = vsyncadd [#allocation7], %s26
      %s28 = sshll.u32 [#allocation6], 4
      %s29 = int_to_ptr.vmem [resolvable:$true] %s28
      %34 = dma.hbm_to_vmem [thread:$0]  %s2, 512, %s29, [#allocation7], 128, 128, 8
    $region13: #{tpu_custom_call.1} parent=1 // pred_fallthru
      _
    // Predicated region
    $region14: #{tpu_custom_call.1} parent=1 // pred_check
      _
    $region15: #{tpu_custom_call.1} parent=1 // pred_check_branch
      %36 = sbr.rel (0) target = $region17
    $region16: #{tpu_custom_call.1} parent=1 // pred_region
      %37 = dma.done [#allocation4], 64
    $region17: #{tpu_custom_call.1} parent=1 // pred_fallthru
      _
    // Predicated region
    $region18: #{tpu_custom_call.1} parent=1 // pred_check
      _
    $region19: #{tpu_custom_call.1} parent=1 // pred_check_branch
      %39 = sbr.rel (0) target = $region21
    $region20: #{tpu_custom_call.1} parent=1 // pred_region
      %40 = dma.done [#allocation7], 512
    $region21: #{tpu_custom_call.1} parent=1 // pred_fallthru
      _
    %v41 = vld [vmem:[#allocation3] sm:$0x7]
    %v42 = vld [vmem:[%s1] sm:$0x1]
    %43 = vst [vmem:[#allocation2] sm:$0x1] 0.0
    %44 = vst [vmem:[#allocation2 + $0x18] sm:$0x1] 0.0
    %v45 = vld [vmem:[#allocation6] sm:$0xff]
    %v46 = vld [vmem:[#allocation6 + $0x8] sm:$0xff]
    %v47 = vld [vmem:[#allocation6 + $0x10] sm:$0xff]
    %v48 = vld [vmem:[#allocation6 + $0x18] sm:$0xff]
    %49 = vst [vmem:[#allocation2 + $0x1] sm:$0xff] %v45
    %50 = vst [vmem:[#allocation2 + $0x9] sm:$0xff] %v46
    %51 = vst [vmem:[#allocation2 + $0x19] sm:$0xff] %v47
    %52 = vst [vmem:[#allocation2 + $0x21] sm:$0xff] %v48
    %53 = vst [vmem:[#allocation2 + $0x11] sm:$0x1] 0.0
    %54 = vst [vmem:[#allocation2 + $0x29] sm:$0x1] 0.0
    %v55 = vld [vmem:[#allocation2] sm:$0xff]
    %v56 = vld [vmem:[#allocation2 + $0x8] sm:$0xff]
    %v57 = vld [vmem:[#allocation2 + $0x18] sm:$0xff]
    %v58 = vld [vmem:[#allocation2 + $0x20] sm:$0xff]
    %v59 = vlaneseq
    %v60 = vshrl.u32 %v59, 7
    %v61 = vsub.s32 0, %v60
    %v62 = vrot.slane %v41, %v61
    %v63 = vmul.f32 %v55, %v62
    %v64 = vmul.f32 %v56, %v62
    %v65 = vmul.f32 %v57, %v62
    %v66 = vmul.f32 %v58, %v62
    %v67 = vld [vmem:[#allocation2 + $0x1] sm:$0xff]
    %v68 = vld [vmem:[#allocation2 + $0x9] sm:$0xff]
    %v69 = vld [vmem:[#allocation2 + $0x19] sm:$0xff]
    %v70 = vld [vmem:[#allocation2 + $0x21] sm:$0xff]
    %v71 = vlaneseq
    %v72 = vshrl.u32 %v71, 7
    %v73 = vsub.s32 1, %v72
    %v74 = vrot.slane %v41, %v73
    %v75 = vmul.f32 %v67, %v74
    %v76 = vmul.f32 %v68, %v74
    %v77 = vmul.f32 %v69, %v74
    %v78 = vmul.f32 %v70, %v74
    %v79 = vadd.f32 %v63, %v75
    %v80 = vadd.f32 %v64, %v76
    %v81 = vadd.f32 %v65, %v77
    %v82 = vadd.f32 %v66, %v78
    %v83 = vld [vmem:[#allocation2 + $0x2] sm:$0xff]
    %v84 = vld [vmem:[#allocation2 + $0xa] sm:$0xff]
    %v85 = vld [vmem:[#allocation2 + $0x1a] sm:$0xff]
    %v86 = vld [vmem:[#allocation2 + $0x22] sm:$0xff]
    %v87 = vlaneseq
    %v88 = vshrl.u32 %v87, 7
    %v89 = vsub.s32 2, %v88
    %v90 = vrot.slane %v41, %v89
    %v91 = vmul.f32 %v83, %v90
    %v92 = vmul.f32 %v84, %v90
    %v93 = vmul.f32 %v85, %v90
    %v94 = vmul.f32 %v86, %v90
    %v95 = vadd.f32 %v79, %v91
    %v96 = vadd.f32 %v80, %v92
    %v97 = vadd.f32 %v81, %v93
    %v98 = vadd.f32 %v82, %v94
    %v100 = vlaneseq
    %v101 = vshrl.u32 %v100, 7
    %v102 = vsub.s32 0, %v101
    %v103 = vrot.slane %v42, %v102
    %v105 = vadd.f32 %v95, %v103
    %v106 = vadd.f32 %v96, %v103
    %v107 = vadd.f32 %v97, %v103
    %v108 = vadd.f32 %v98, %v103
    %109 = vst [vmem:[#allocation8] sm:$0xff] %v105
    %110 = vst [vmem:[#allocation8 + $0x8] sm:$0xff] %v106
    %111 = vst [vmem:[#allocation8 + $0x10] sm:$0xff] %v107
    %112 = vst [vmem:[#allocation8 + $0x18] sm:$0xff] %v108
    // Predicated region
    $region22: #{tpu_custom_call.1} parent=1 // pred_check
      _
    $region23: #{tpu_custom_call.1} parent=1 // pred_check_branch
      %114 = sbr.rel (0) target = $region25
    $region24: #{tpu_custom_call.1} parent=1 // pred_region
      %s116 = ssub.s32 512, 512
      %117 = vsyncadd [#allocation5], %s116
      %s118 = sshll.u32 [#allocation8], 4
      %s119 = int_to_ptr.vmem [resolvable:$true] %s118
      %124 = dma.vmem_to_hbm [thread:$0]  %s119, 512, %s3, [#allocation5], 128, 128, 8
    $region25: #{tpu_custom_call.1} parent=1 // pred_fallthru
      _
    // Predicated region
    $region26: #{tpu_custom_call.1} parent=1 // pred_check
      _
    $region27: #{tpu_custom_call.1} parent=1 // pred_check_branch
      %126 = sbr.rel (0) target = $region29
    $region28: #{tpu_custom_call.1} parent=1 // pred_region
      %127 = dma.done [#allocation5], 512
    $region29: #{tpu_custom_call.1} parent=1 // pred_fallthru
      _
    %128 = vsyncpa [#allocation4], 1
    %129 = vsyncpa [#allocation7], 1
    %130 = vsyncpa [#allocation5], 1

</llo_original>
